<compile_context>
chip_gen: v5e
topology: v5e:2x2
jax: 0.10.0
libtpu: 0.0.40
codegen_flags: <defaults>
</compile_context>

<pallas_src>
import jax
import jax.numpy as jnp
from jax.experimental import pallas as pl
from jax.experimental.pallas import tpu as pltpu


# --------------------------------------------------------------------------
# Kernel: one batch element per grid step, all tensors lane-dense (S on lanes)
# --------------------------------------------------------------------------
def patch_embed_kernel(x_ref, w_ref, b_ref, o_ref):
    # x_ref: (1, C, S)   w_ref: (E, C)  (torch Linear weight layout: out, in)
    # b_ref: (E, 1)      o_ref: (1, E, S)
    x_t = x_ref[0]                                                # (C, S)
    y_t = jnp.dot(w_ref[...], x_t, preferred_element_type=jnp.float32)  # (E, S)
    o_ref[0] = y_t + b_ref[...]                                   # bias bcast over lanes


# --------------------------------------------------------------------------
# Wrapper: einops 'b c h w -> b (h w) c' + Linear, via the transposed kernel
# --------------------------------------------------------------------------
def patch_embedding(feature_map, w, b):
    """feature_map: (B, C, H, W) f32; w: (E, C) torch-Linear weight; b: (E,)."""
    B, C, H, W = feature_map.shape
    E = w.shape[0]
    S = H * W

    # 'b c h w -> b c (h w)' is a free (contiguous) reshape; S lands on lanes.
    x_t = feature_map.reshape(B, C, S)
    b2 = b.reshape(E, 1)

    out_t = pl.pallas_call(
        patch_embed_kernel,
        out_shape=jax.ShapeDtypeStruct((B, E, S), jnp.float32),
        grid_spec=pltpu.PrefetchScalarGridSpec(
            num_scalar_prefetch=0,
            grid=(B,),
            in_specs=[
                pl.BlockSpec((1, C, S), lambda i: (i, 0, 0)),   # activations
                pl.BlockSpec((E, C), lambda i: (0, 0)),         # weight (resident)
                pl.BlockSpec((E, 1), lambda i: (0, 0)),         # bias   (resident)
            ],
            out_specs=pl.BlockSpec((1, E, S), lambda i: (i, 0, 0)),
        ),
        compiler_params=pltpu.CompilerParams(
            dimension_semantics=("parallel",),  # B axis -> both TCs on v7x
        ),
    )(x_t, w, b2)

    # Layout plumbing only: (B, E, S) -> (B, S, E) == 'b (h w) c' projected.
    return jnp.transpose(out_t, (0, 2, 1))


if __name__ == "__main__":
    # Small shapes consistent with the module's forward.
    B, C, H, W = 2, 4, 16, 16          # seq len S = 256
    E = 32                             # embed_dim

    key = jax.random.PRNGKey(0)
    kx, kw, kb = jax.random.split(key, 3)
    x = jax.random.normal(kx, (B, C, H, W), jnp.float32)
    w = 0.02 * jax.random.normal(kw, (E, C), jnp.float32)   # (out_features, in_features)
    b = 0.02 * jax.random.normal(kb, (E,), jnp.float32)

    out = patch_embedding(x, w, b)
    out = jax.block_until_ready(out)

    # Pure-JAX reference: einops rearrange + Linear (y = x @ W^T + b)
    patches = jnp.transpose(x, (0, 2, 3, 1)).reshape(B, H * W, C)
    ref = patches @ w.T + b

    assert out.shape == (B, H * W, E)
    assert jnp.allclose(out, ref, rtol=1e-5, atol=1e-5)
    print("KERNEL_OK")
</pallas_src>

<mosaic_0001>
module attributes {stable_mosaic.version = 11 : i64} {
  func.func @patch_embed_kernel(%arg0: i32, %arg1: memref<1x4x256xf32, #tpu.memory_space<vmem>>, %arg2: memref<32x4xf32, #tpu.memory_space<vmem>>, %arg3: memref<32x1xf32, #tpu.memory_space<vmem>>, %arg4: memref<1x32x256xf32, #tpu.memory_space<vmem>>) attributes {dimension_semantics = [#tpu.dimension_semantics<parallel>], iteration_bounds = array<i64: 2>, scalar_prefetch = 0 : i64, scratch_operands = 0 : i64, tpu.core_type = #tpu.core_type<tc>, window_params = [{transform_indices = @transform_0, window_bounds = array<i64: 1, 4, 256>}, {pipeline_mode = #tpu.pipeline_mode<synchronous>, transform_indices = @transform_1, window_bounds = array<i64: 32, 4>}, {pipeline_mode = #tpu.pipeline_mode<synchronous>, transform_indices = @transform_2, window_bounds = array<i64: 32, 1>}, {transform_indices = @transform_3, window_bounds = array<i64: 1, 32, 256>}]} {
    %c0 = arith.constant 0 : index
    %c0_0 = arith.constant 0 : index
    %c0_1 = arith.constant 0 : index
    %0 = vector.load %arg1[%c0, %c0_0, %c0_1] : memref<1x4x256xf32, #tpu.memory_space<vmem>>, vector<1x4x256xf32>
    %1 = vector.shape_cast %0 : vector<1x4x256xf32> to vector<4x256xf32>
    %c0_2 = arith.constant 0 : index
    %c0_3 = arith.constant 0 : index
    %2 = vector.load %arg2[%c0_2, %c0_3] : memref<32x4xf32, #tpu.memory_space<vmem>>, vector<32x4xf32>
    %cst = arith.constant dense<0.000000e+00> : vector<32x256xf32>
    %3 = tpu.matmul %2, %1, %cst {dimension_numbers = #tpu.dot_dimension_numbers<[1], [0], [0], [1], [0, 0, 1, 1], [], []>} : vector<32x4xf32>, vector<4x256xf32>, vector<32x256xf32> -> vector<32x256xf32>
    %c0_4 = arith.constant 0 : index
    %c0_5 = arith.constant 0 : index
    %4 = vector.load %arg3[%c0_4, %c0_5] : memref<32x1xf32, #tpu.memory_space<vmem>>, vector<32x1xf32>
    %5 = vector.broadcast %4 : vector<32x1xf32> to vector<32x256xf32>
    %6 = arith.addf %3, %5 : vector<32x256xf32>
    %c0_6 = arith.constant 0 : index
    %c0_7 = arith.constant 0 : index
    %c0_8 = arith.constant 0 : index
    %7 = vector.load %arg4[%c0_6, %c0_7, %c0_8] : memref<1x32x256xf32, #tpu.memory_space<vmem>>, vector<1x32x256xf32>
    %8 = vector.shape_cast %7 : vector<1x32x256xf32> to vector<32x256xf32>
    %9 = vector.shape_cast %6 : vector<32x256xf32> to vector<1x32x256xf32>
    tpu.vector_store %arg4[%c0_6, %c0_7, %c0_8], %9 {strides = array<i32>} : memref<1x32x256xf32, #tpu.memory_space<vmem>>, vector<1x32x256xf32>,
    return
  }
  func.func @transform_0(%arg0: i32) -> (i32, i32, i32) {
    %c0_i32 = arith.constant 0 : i32
    %c0_i32_0 = arith.constant 0 : i32
    %c0_i32_1 = arith.constant 0 : i32
    return %arg0, %c0_i32, %c0_i32_0 : i32, i32, i32
  }
  func.func @transform_1(%arg0: i32) -> (i32, i32) {
    %c0_i32 = arith.constant 0 : i32
    %c0_i32_0 = arith.constant 0 : i32
    %c0_i32_1 = arith.constant 0 : i32
    return %c0_i32, %c0_i32_0 : i32, i32
  }
  func.func @transform_2(%arg0: i32) -> (i32, i32) {
    %c0_i32 = arith.constant 0 : i32
    %c0_i32_0 = arith.constant 0 : i32
    %c0_i32_1 = arith.constant 0 : i32
    return %c0_i32, %c0_i32_0 : i32, i32
  }
  func.func @transform_3(%arg0: i32) -> (i32, i32, i32) {
    %c0_i32 = arith.constant 0 : i32
    %c0_i32_0 = arith.constant 0 : i32
    %c0_i32_1 = arith.constant 0 : i32
    return %arg0, %c0_i32, %c0_i32_0 : i32, i32, i32
  }
}

</mosaic_0001>

<llo_original>
// kernel: tpu_custom_call.1
$region0: #{tpu_custom_call.1}
  #allocation0 [shape = 'u32[]', space=smem, size = 0x4, offset = 0x4, fixed_abs, tag = 'smem constant byte address 0x4 - core index']
  #allocation1 [shape = 'u32[72,128]{1,0:T(1,128)}', space=vmem, size = 0x9000, scoped, tag = 'internal scratch']
  %s0 = inlined_call_operand.vmem [shape: f32[2,4,256], index: 0, kind: input, shape index: {}]
  %s1 = inlined_call_operand.vmem [shape: f32[32,4], index: 1, kind: input, shape index: {}]
  %s2 = inlined_call_operand.vmem [shape: f32[32,1], index: 2, kind: input, shape index: {}]
  %s3 = inlined_call_operand.hbm [shape: f32[2,32,256], index: 3, kind: output, shape index: {}]
  %s4 = sld [smem:[#allocation0]]
  $region45: #{tpu_custom_call.1} parent=0
    _
  %s6 = ssub.s32 1, %s4
  %s7 = scalar_select 0, %s6, %s4
  $region1: #{tpu_custom_call.1} parent=0
    #allocation2 [shape = 'u8[65536]{0}', space=vmem, size = 0x10000, scoped, tag = 'output window, operand 0']
    #allocation3 [shape = 's32[2]{0}', space=sflag, size = 0x8, scoped, tag = 'scoped memory for tpu_custom_call.1']
    %8 = vsyncpa [#allocation3], 0
    %s9 = scalar_lea.sflag [#allocation3], 1
    %10 = vsyncpa %s9, 0
    loop: start=0, step=1, limit=4
    $region2: #{tpu_custom_call.1} parent=1 // loop_pre_header
      _
    $region3: #{tpu_custom_call.1} parent=1 // loop_header
      %s12 = sphi 0, %s16
      %p13 = scmp.ge.s32.totalorder %s12, 4
      %s22 = sphi 0, %s24
      %s25 = sphi 0, %s22
      %s26 = sphi 0, %s25
      %s42 = sphi 0, %s26
      %s46 = sphi 0, %s46
      %s48 = sphi 0, %s46
      %s49 = sphi 0, %s48
      %s63 = sphi 0, %s49
      %s67 = sphi 0, %s67
      %s69 = sphi 0, %s67
      %s70 = sphi 0, %s69
      %s84 = sphi 0, %s70
      %s90 = sphi 0, %s92
      %s93 = sphi 0, %s90
      %s94 = sphi 0, %s93
      %s110 = sphi 0, %s94
    $region4: #{tpu_custom_call.1} parent=1 // loop_header_branch
      %15 = sbr.rel (%p13) target = $region8
    $region5: #{tpu_custom_call.1} parent=1 // loop_body
      %s17 = ssub.s32 %s12, 1
      %s18 = ssub.s32 %s12, 2
      %s19 = sadd.s32 %s12, 1
      %s20 = ssub.s32 %s12, %s19
      %p21 = scmp.eq.s32.totalorder %s20, 0
      %s23 = sadd.s32 %s22, 1
      %s24 = scalar_select %p21, %s22, %s23
      %p27 = pneg %p21
      %p28 = scmp.eq.s32.totalorder %s12, 1
      %p29 = por %p27, %p28
      %p30 = scmp.ne.s32.totalorder %s22, %s25
      %p31 = scmp.eq.s32.totalorder %s12, 0
      %p32 = por %p30, %p31
      %p33 = scmp.ne.s32.totalorder %s22, %s25
      %p34 = scmp.eq.s32.totalorder %s17, 1
      %p35 = por %p33, %p34
      %p36 = scmp.ne.s32.totalorder %s25, %s26
      %p37 = scmp.eq.s32.totalorder %s17, 0
      %p38 = por %p36, %p37
      %p39 = scmp.ne.s32.totalorder %s25, %s26
      %p40 = scmp.eq.s32.totalorder %s18, 1
      %p41 = por %p39, %p40
      %p43 = scmp.ne.s32.totalorder %s26, %s42
      %p44 = scmp.eq.s32.totalorder %s18, 0
      %p45 = por %p43, %p44
      %s47 = sadd.s32 %s46, 1
      %p50 = scmp.eq.s32.totalorder %s12, 1
      %p51 = scmp.ne.s32.totalorder %s46, %s48
      %p52 = scmp.eq.s32.totalorder %s12, 0
      %p53 = por %p51, %p52
      %p54 = scmp.ne.s32.totalorder %s46, %s48
      %p55 = scmp.eq.s32.totalorder %s17, 1
      %p56 = por %p54, %p55
      %p57 = scmp.ne.s32.totalorder %s48, %s49
      %p58 = scmp.eq.s32.totalorder %s17, 0
      %p59 = por %p57, %p58
      %p60 = scmp.ne.s32.totalorder %s48, %s49
      %p61 = scmp.eq.s32.totalorder %s18, 1
      %p62 = por %p60, %p61
      %p64 = scmp.ne.s32.totalorder %s49, %s63
      %p65 = scmp.eq.s32.totalorder %s18, 0
      %p66 = por %p64, %p65
      %s68 = sadd.s32 %s67, 1
      %p71 = scmp.eq.s32.totalorder %s12, 1
      %p72 = scmp.ne.s32.totalorder %s67, %s69
      %p73 = scmp.eq.s32.totalorder %s12, 0
      %p74 = por %p72, %p73
      %p75 = scmp.ne.s32.totalorder %s67, %s69
      %p76 = scmp.eq.s32.totalorder %s17, 1
      %p77 = por %p75, %p76
      %p78 = scmp.ne.s32.totalorder %s69, %s70
      %p79 = scmp.eq.s32.totalorder %s17, 0
      %p80 = por %p78, %p79
      %p81 = scmp.ne.s32.totalorder %s69, %s70
      %p82 = scmp.eq.s32.totalorder %s18, 1
      %p83 = por %p81, %p82
      %p85 = scmp.ne.s32.totalorder %s70, %s84
      %p86 = scmp.eq.s32.totalorder %s18, 0
      %p87 = por %p85, %p86
      %s88 = ssub.s32 %s12, %s19
      %p89 = scmp.eq.s32.totalorder %s88, 0
      %s91 = sadd.s32 %s90, 1
      %s92 = scalar_select %p89, %s90, %s91
      %p95 = pneg %p89
      %p96 = scmp.eq.s32.totalorder %s12, 1
      %p97 = por %p95, %p96
      %p98 = scmp.ne.s32.totalorder %s90, %s93
      %p99 = scmp.eq.s32.totalorder %s12, 0
      %p100 = por %p98, %p99
      %p101 = scmp.ne.s32.totalorder %s90, %s93
      %p102 = scmp.eq.s32.totalorder %s17, 1
      %p103 = por %p101, %p102
      %p104 = scmp.ne.s32.totalorder %s93, %s94
      %p105 = scmp.eq.s32.totalorder %s17, 0
      %p106 = por %p104, %p105
      %p107 = scmp.ne.s32.totalorder %s93, %s94
      %p108 = scmp.eq.s32.totalorder %s18, 1
      %p109 = por %p107, %p108
      %p111 = scmp.ne.s32.totalorder %s94, %s110
      %p112 = scmp.eq.s32.totalorder %s18, 0
      %p113 = por %p111, %p112
      %p114 = scmp.le.s32.totalorder 1, %s12
      %p115 = scmp.lt.s32.totalorder %s12, 3
      %p116 = pnand %p114, %p115
      %p117 = pneg %p116
      // Predicated region
      $region9: #{tpu_custom_call.1} parent=5 // pred_check
        _
      $region10: #{tpu_custom_call.1} parent=5 // pred_check_branch
        %119 = sbr.rel (%p116) target = $region12
      $region11: #{tpu_custom_call.1} parent=5 // pred_region
        %s120 = ssub.s32 %s12, 1
        // Predicated region
        $region13: #{tpu_custom_call.1} parent=11 // pred_check
          %p121 = pneg %p59
        $region14: #{tpu_custom_call.1} parent=11 // pred_check_branch
          %123 = sbr.rel (%p121) target = $region16
        $region15: #{tpu_custom_call.1} parent=11 // pred_region
          _
        $region16: #{tpu_custom_call.1} parent=11 // pred_fallthru
          _
        // Predicated region
        $region17: #{tpu_custom_call.1} parent=11 // pred_check
          %p124 = pneg %p80
        $region18: #{tpu_custom_call.1} parent=11 // pred_check_branch
          %126 = sbr.rel (%p124) target = $region20
        $region19: #{tpu_custom_call.1} parent=11 // pred_region
          _
        $region20: #{tpu_custom_call.1} parent=11 // pred_fallthru
          _
      $region12: #{tpu_custom_call.1} parent=5 // pred_fallthru
        _
      %p127 = scmp.lt.s32.totalorder %s12, 2
      // Predicated region
      $region21: #{tpu_custom_call.1} parent=5 // pred_check
        %p128 = pneg %p127
      $region22: #{tpu_custom_call.1} parent=5 // pred_check_branch
        %130 = sbr.rel (%p128) target = $region24
      $region23: #{tpu_custom_call.1} parent=5 // pred_region
        // Predicated region
        $region25: #{tpu_custom_call.1} parent=23 // pred_check
          %p131 = pneg %p32
        $region26: #{tpu_custom_call.1} parent=23 // pred_check_branch
          %133 = sbr.rel (%p131) target = $region28
        $region27: #{tpu_custom_call.1} parent=23 // pred_region
          %p134 = scmp.lt.s32.totalorder %s12, 1
          %s135 = scalar_select %p134, %s12, 1
          %s136 = smul.addr %s135, 2
          %s137 = smul.addr %s136, 4
          %s138 = scalar_lea.vmem %s0, %s137
        $region28: #{tpu_custom_call.1} parent=23 // pred_fallthru
          _
      $region24: #{tpu_custom_call.1} parent=5 // pred_fallthru
        _
      %p139 = scmp.le.s32.totalorder 1, %s12
      %p140 = scmp.lt.s32.totalorder %s12, 3
      %p141 = pnand %p139, %p140
      %p142 = pneg %p141
      // Predicated region
      $region29: #{tpu_custom_call.1} parent=5 // pred_check
        _
      $region30: #{tpu_custom_call.1} parent=5 // pred_check_branch
        %144 = sbr.rel (%p141) target = $region32
      $region31: #{tpu_custom_call.1} parent=5 // pred_region
        %s145 = ssub.s32 %s12, 1
        %p146 = scmp.lt.s32.totalorder %s17, 1
        %s147 = scalar_select %p146, %s17, 1
        %s148 = smul.addr %s147, 2
        %s149 = smul.addr %s148, 4
        %s150 = scalar_lea.vmem %s0, %s149
        %p151 = pneg %p38
        %p152 = pneg %p35
        %p153 = pneg %p59
        %p154 = pneg %p56
        %p155 = pneg %p80
        %p156 = pneg %p77
        %p157 = pneg %p106
        %p158 = pneg %p103
        %s159 = sand.u32 %s93, 1
        %s160 = scalar_lea.sflag [#allocation3], %s159
        %s161 = sand.u32 %s93, 1
        %s162 = smul.addr %s161, 64
        %s163 = scalar_lea.vmem [#allocation2], %s162
        %p164 = scmp.lt.s32.totalorder %s17, 1
        %s165 = scalar_select %p164, %s17, 1
        %s166 = smul.addr %s165, 2
        %s167 = smul.addr %s166, 4
        %s168 = scalar_lea.vmem %s0, %s167
        %v169 = vld [vmem:[%s168] sm:$0xff]
        %v170 = vld [vmem:[%s1] sm:$0xff]
        %v171 = vld [vmem:[%s1 + $0x8] sm:$0xff]
        %v172 = vld [vmem:[%s1 + $0x10] sm:$0xff]
        %v173 = vld [vmem:[%s1 + $0x18] sm:$0xff]
        %v174 = vld [vmem:[%s2] sm:$0xff]
        %v175 = vld [vmem:[%s2 + $0x8] sm:$0xff]
        %v176 = vld [vmem:[%s2 + $0x10] sm:$0xff]
        %v177 = vld [vmem:[%s2 + $0x18] sm:$0xff]
        %179 = vset.pattern.permute.xlu0 0
        %180 = vperm.xlu0 %179, %v174
        %v181 = vpop.permute.xlu0 %180
        %184 = vset.pattern.permute.xlu0 0
        %185 = vperm.xlu0 %184, %v175
        %v186 = vpop.permute.xlu0 %185
        %189 = vset.pattern.permute.xlu0 0
        %190 = vperm.xlu0 %189, %v176
        %v191 = vpop.permute.xlu0 %190
        %194 = vset.pattern.permute.xlu0 0
        %195 = vperm.xlu0 %194, %v177
        %v196 = vpop.permute.xlu0 %195
        %199 = vst [vmem:[#allocation1] ss:$2 sm:$0xff] %v169
        %v200 = vld.sshfl [vmem:[#allocation1] sm:$0xff pattern:$0x75316420]
        %v201 = vld.sshfl [vmem:[#allocation1 + $0x8] sm:$0xff pattern:$0x75316420]
        %vm202 = vcmask 31744
        %v204 = vsel %vm202, %v170, 0
        %v207 = vsel %vm202, %v171, 0
        %v210 = vsel %vm202, %v172, 0
        %v213 = vsel %vm202, %v173, 0
        %vm215 = vcmask 1043456
        %v216 = vsel %vm215, %v200, 0
        %v218 = vsel %vm215, %v201, 0
        %220 = vmatpush.msra.mxu0 0.0
        %221 = vmatpush.msra.mxu0 0.0
        %222 = vmatpush.msra.mxu0 0.0
        %223 = vmatpush.msra.mxu0 0.0
        %224 = vmatpush.msra.mxu0 0.0
        %225 = vmatpush.msra.mxu0 0.0
        %226 = vmatpush.msra.mxu0 0.0
        %227 = vmatpush.msra.mxu0 0.0
        %228 = vmatpush.msra.mxu0 0.0
        %229 = vmatpush.msra.mxu0 0.0
        %230 = vmatpush.msra.mxu0 0.0
        %231 = vmatpush.msra.mxu0 0.0
        %232 = vmatpush.msra.mxu0 0.0
        %233 = vmatpush.msra.mxu0 0.0
        %234 = vmatpush.msra.mxu0 0.0
        %235 = vmatpush.msra.mxu0 %v216
        %236 = vmatmul.f32.gmra.mxu0 %v204
        %v237 = vpop.f32.mrf.mxu0
        %v238 = vadd.f32 %v181, %v237
        %239 = vmatmul.f32.gmra.mxu0 %v207
        %v240 = vpop.f32.mrf.mxu0
        %v241 = vadd.f32 %v186, %v240
        %242 = vmatmul.f32.gmra.mxu0 %v210
        %v243 = vpop.f32.mrf.mxu0
        %v244 = vadd.f32 %v191, %v243
        %245 = vmatmul.f32.gmra.mxu0 %v213
        %v246 = vpop.f32.mrf.mxu0
        %v247 = vadd.f32 %v196, %v246
        %248 = vdwg.mxu0
        %249 = vmatpush.msra.mxu0 0.0
        %250 = vmatpush.msra.mxu0 0.0
        %251 = vmatpush.msra.mxu0 0.0
        %252 = vmatpush.msra.mxu0 0.0
        %253 = vmatpush.msra.mxu0 0.0
        %254 = vmatpush.msra.mxu0 0.0
        %255 = vmatpush.msra.mxu0 0.0
        %256 = vmatpush.msra.mxu0 0.0
        %257 = vmatpush.msra.mxu0 0.0
        %258 = vmatpush.msra.mxu0 0.0
        %259 = vmatpush.msra.mxu0 0.0
        %260 = vmatpush.msra.mxu0 0.0
        %261 = vmatpush.msra.mxu0 0.0
        %262 = vmatpush.msra.mxu0 0.0
        %263 = vmatpush.msra.mxu0 0.0
        %264 = vmatpush.msra.mxu0 %v218
        %265 = vmatmul.f32.gmra.mxu0 %v204
        %v266 = vpop.f32.mrf.mxu0
        %v267 = vadd.f32 %v181, %v266
        %268 = vmatmul.f32.gmra.mxu0 %v207
        %v269 = vpop.f32.mrf.mxu0
        %v270 = vadd.f32 %v186, %v269
        %271 = vmatmul.f32.gmra.mxu0 %v210
        %v272 = vpop.f32.mrf.mxu0
        %v273 = vadd.f32 %v191, %v272
        %274 = vmatmul.f32.gmra.mxu0 %v213
        %v275 = vpop.f32.mrf.mxu0
        %v276 = vadd.f32 %v196, %v275
        %277 = vdwg.mxu0
        %278 = vst [vmem:[%s163] sm:$0xff] %v238
        %279 = vst [vmem:[%s163 + $0x8] sm:$0xff] %v267
        %280 = vst [vmem:[%s163 + $0x10] sm:$0xff] %v241
        %281 = vst [vmem:[%s163 + $0x18] sm:$0xff] %v270
        %282 = vst [vmem:[%s163 + $0x20] sm:$0xff] %v244
        %283 = vst [vmem:[%s163 + $0x28] sm:$0xff] %v273
        %284 = vst [vmem:[%s163 + $0x30] sm:$0xff] %v247
        %285 = vst [vmem:[%s163 + $0x38] sm:$0xff] %v276
        %s286 = sand.u32 %s93, 1
        %s287 = scalar_lea.sflag [#allocation3], %s286
        %s288 = sand.u32 %s93, 1
        %s289 = smul.addr %s288, 64
        %s290 = scalar_lea.vmem [#allocation2], %s289
        // Predicated region
        $region33: #{tpu_custom_call.1} parent=31 // pred_check
          %p291 = pneg %p103
        $region34: #{tpu_custom_call.1} parent=31 // pred_check_branch
          %293 = sbr.rel (%p291) target = $region36
        $region35: #{tpu_custom_call.1} parent=31 // pred_region
          %295 = vsyncadd %s287, 0
          %s296 = smul.addr %s17, 8
          %s297 = smul.addr %s296, 8
          %s298 = scalar_lea.hbm %s3, %s297
          %s299 = sshll.u32 %s290, 4
          %s300 = int_to_ptr.vmem [resolvable:$true] %s299
          %s301 = sshll.u32 %s298, 4
          %s302 = int_to_ptr.hbm [resolvable:$true] %s301
          %307 = dma.vmem_to_hbm [thread:$0]  %s300, 1024, %s302, %s287, 256, 256, 16
        $region36: #{tpu_custom_call.1} parent=31 // pred_fallthru
          _
      $region32: #{tpu_custom_call.1} parent=5 // pred_fallthru
        _
      %p308 = scmp.le.s32.totalorder 2, %s12
      // Predicated region
      $region37: #{tpu_custom_call.1} parent=5 // pred_check
        %p309 = pneg %p308
      $region38: #{tpu_custom_call.1} parent=5 // pred_check_branch
        %311 = sbr.rel (%p309) target = $region40
      $region39: #{tpu_custom_call.1} parent=5 // pred_region
        %s312 = ssub.s32 %s12, 2
        // Predicated region
        $region41: #{tpu_custom_call.1} parent=39 // pred_check
          %p313 = pneg %p109
        $region42: #{tpu_custom_call.1} parent=39 // pred_check_branch
          %315 = sbr.rel (%p313) target = $region44
        $region43: #{tpu_custom_call.1} parent=39 // pred_region
          %s316 = sand.u32 %s94, 1
          %s317 = scalar_lea.sflag [#allocation3], %s316
          %s318 = sand.u32 %s94, 1
          %s319 = smul.addr %s318, 64
          %s320 = scalar_lea.vmem [#allocation2], %s319
          %322 = dma.done %s317, 1024
        $region44: #{tpu_custom_call.1} parent=39 // pred_fallthru
          _
      $region40: #{tpu_custom_call.1} parent=5 // pred_fallthru
        _
    $region6: #{tpu_custom_call.1} parent=1 // loop_footer
      %s16 = sadd.s32 1, %s12
    $region7: #{tpu_custom_call.1} parent=1 // loop_footer_branch
      %11 = sbr.rel target = $region3
    $region8: #{tpu_custom_call.1} parent=1 // loop_exit
      _
    %323 = vsyncpa [#allocation3], 1
    %s324 = scalar_lea.sflag [#allocation3], 1
    %325 = vsyncpa %s324, 1

</llo_original>
